<compile_context>
chip_gen: v6e
topology: v6e:2x2x1
jax: 0.10.0
libtpu: 0.0.40
codegen_flags: <defaults>
</compile_context>

<pallas_src>
import functools

import jax
import jax.numpy as jnp
from jax.experimental import pallas as pl
from jax.experimental.pallas import tpu as pltpu

_EPS = 1e-10


def _round_up(x, m):
    return (x + m - 1) // m * m


def _avu_kernel(logits_ref, labels_ref, out_ref, acc_ref, *,
                beta, threshold, n_valid, tile_n):
    pid = pl.program_id(0)

    @pl.when(pid == 0)
    def _():
        acc_ref[0] = jnp.float32(0.0)   # numerator   (n_ac + n_iu)
        acc_ref[1] = jnp.float32(0.0)   # denominator (n_ac + n_au + n_ic + n_iu)

    logits = logits_ref[...].astype(jnp.float32)            # (TILE_N, C)
    labels = labels_ref[...]                                 # (TILE_N, 1) int32

    # Mask for padded rows of the last (remainder) tile.
    row = jax.lax.broadcasted_iota(jnp.int32, (tile_n, 1), 0)
    valid = (pid * tile_n + row) < n_valid                   # (TILE_N, 1) bool

    # Softmax pieces — never materialise log(probs).
    m = jnp.max(logits, axis=-1, keepdims=True)              # (TILE_N, 1)
    shifted = logits - m
    e = jnp.exp(shifted)                                     # (TILE_N, C)
    sum_e = jnp.sum(e, axis=-1, keepdims=True)               # (TILE_N, 1)
    conf = pl.reciprocal(sum_e)                              # == max(probs): max(e)==1
    probs = e * conf                                         # (TILE_N, C)

    # Entropy via logsumexp identity: H = log(sum_e) - sum(p * shifted).
    unc = jnp.log(sum_e) - jnp.sum(probs * shifted, axis=-1, keepdims=True)

    # "correct": the label column attains the per-row max of the logits.
    col = jax.lax.broadcasted_iota(jnp.int32, logits.shape, 1)
    correct = jnp.any(jnp.logical_and(col == labels, logits >= m),
                      axis=-1, keepdims=True)                # (TILE_N, 1) bool
    certain = unc <= threshold                               # (TILE_N, 1) bool
    t = jnp.tanh(unc)

    # Fused bucket sums — the 4 AvU buckets partition the samples:
    #   correct ? conf : 1-conf   times   certain ? 1-t : t
    a = jnp.where(correct, conf, 1.0 - conf)
    b = jnp.where(certain, 1.0 - t, t)
    contrib = a * b
    zero = jnp.zeros_like(contrib)
    den_t = jnp.sum(jnp.where(valid, contrib, zero))
    num_t = jnp.sum(jnp.where(jnp.logical_and(valid, correct == certain),
                              contrib, zero))

    acc_ref[0] = acc_ref[0] + num_t
    acc_ref[1] = acc_ref[1] + den_t

    @pl.when(pid == pl.num_programs(0) - 1)
    def _():
        avu = acc_ref[0] / (acc_ref[1] + _EPS)
        loss = -beta * jnp.log(avu + _EPS)
        out_ref[...] = jnp.full((1, 1), loss, dtype=jnp.float32)


def avu_loss(logits, labels, optimal_uncertainty_threshold, beta=1.0,
             tile_n=512):
    """Pallas implementation of AvULoss.forward (type=0). Returns shape (1,)."""
    n, c = logits.shape
    labels2 = labels.astype(jnp.int32).reshape(n, 1)

    # Sublane-aligned tile; clamp to the (padded) batch size.
    tile_n = max(8, min(_round_up(int(tile_n), 8), _round_up(n, 8)))
    num_tiles = pl.cdiv(n, tile_n)

    kernel = functools.partial(
        _avu_kernel,
        beta=float(beta),
        threshold=float(optimal_uncertainty_threshold),
        n_valid=n,
        tile_n=tile_n,
    )

    out = pl.pallas_call(
        kernel,
        out_shape=jax.ShapeDtypeStruct((1, 1), jnp.float32),
        grid_spec=pltpu.PrefetchScalarGridSpec(
            num_scalar_prefetch=0,
            grid=(num_tiles,),
            in_specs=[
                pl.BlockSpec((tile_n, c), lambda i: (i, 0)),   # logits tile
                pl.BlockSpec((tile_n, 1), lambda i: (i, 0)),   # labels tile
            ],
            out_specs=pl.BlockSpec((1, 1), lambda i: (0, 0)),  # scalar loss
            scratch_shapes=[pltpu.SMEM((2,), jnp.float32)],    # (num, den)
        ),
        # Running reduction over the batch axis -> "arbitrary".
        # (For very large tiles on v5e, raise vmem_limit_bytes here.)
        compiler_params=pltpu.CompilerParams(
            dimension_semantics=("arbitrary",),
        ),
    )(logits, labels2)
    return out.reshape(1)


def _avu_loss_ref(logits, labels, threshold, beta=1.0):
    """Pure-JAX reference mirroring the PyTorch forward (type=0)."""
    probs = jax.nn.softmax(logits.astype(jnp.float32), axis=1)
    conf = jnp.max(probs, axis=1)
    pred = jnp.argmax(probs, axis=1)
    unc = -jnp.sum(probs * jnp.log(probs + _EPS), axis=-1)
    correct = labels == pred
    certain = unc <= threshold
    t = jnp.tanh(unc)
    n_ac = jnp.sum(jnp.where(correct & certain, conf * (1 - t), 0.0))
    n_au = jnp.sum(jnp.where(correct & ~certain, conf * t, 0.0))
    n_ic = jnp.sum(jnp.where(~correct & certain, (1 - conf) * (1 - t), 0.0))
    n_iu = jnp.sum(jnp.where(~correct & ~certain, (1 - conf) * t, 0.0))
    avu = (n_ac + n_iu) / (n_ac + n_au + n_ic + n_iu + _EPS)
    return (-beta * jnp.log(avu + _EPS)).reshape(1)


if __name__ == "__main__":
    key = jax.random.PRNGKey(0)
    k1, k2 = jax.random.split(key)

    # Small shapes; N=20 with tile_n=8 exercises multi-tile accumulation
    # (grid of 3) and remainder-row masking (last tile has 4 valid rows).
    N, C = 20, 16
    logits = jax.random.normal(k1, (N, C), dtype=jnp.float32) * 2.0
    labels = jax.random.randint(k2, (N,), 0, C, dtype=jnp.int32)
    threshold = 1.0  # optimal_uncertainty_threshold

    loss = avu_loss(logits, labels, threshold, beta=1.0, tile_n=8)
    jax.block_until_ready(loss)

    ref = _avu_loss_ref(logits, labels, threshold, beta=1.0)
    assert jnp.allclose(loss, ref, atol=1e-5, rtol=1e-5), (loss, ref)

    print("KERNEL_OK")
</pallas_src>

<mosaic_0001>
module attributes {stable_mosaic.version = 11 : i64} {
  func.func @_avu_kernel(%arg0: i32, %arg1: memref<8x16xf32, #tpu.memory_space<vmem>>, %arg2: memref<8x1xi32, #tpu.memory_space<vmem>>, %arg3: memref<1x1xf32, #tpu.memory_space<vmem>>, %arg4: memref<2xf32, #tpu.memory_space<smem>>) attributes {dimension_semantics = [#tpu.dimension_semantics<arbitrary>], iteration_bounds = array<i64: 3>, scalar_prefetch = 0 : i64, scratch_operands = 1 : i64, tpu.core_type = #tpu.core_type<tc>, window_params = [{transform_indices = @transform_0, window_bounds = array<i64: 8, 16>}, {transform_indices = @transform_1, window_bounds = array<i64: 8, 1>}, {pipeline_mode = #tpu.pipeline_mode<synchronous>, transform_indices = @transform_2, window_bounds = array<i64: 1, 1>}]} {
    %c0_i32 = arith.constant 0 : i32
    %0 = arith.cmpi eq, %arg0, %c0_i32 : i32
    %1 = arith.extui %0 : i1 to i32
    %c0_i32_0 = arith.constant 0 : i32
    %2 = arith.cmpi ne, %1, %c0_i32_0 : i32
    scf.if %2 {
      %cst_21 = arith.constant 0.000000e+00 : f32
      %c0_22 = arith.constant 0 : index
      %72 = memref.load %arg4[%c0_22] : memref<2xf32, #tpu.memory_space<smem>>
      memref.store %cst_21, %arg4[%c0_22] : memref<2xf32, #tpu.memory_space<smem>>
      %cst_23 = arith.constant 0.000000e+00 : f32
      %c1_24 = arith.constant 1 : index
      %73 = memref.load %arg4[%c1_24] : memref<2xf32, #tpu.memory_space<smem>>
      memref.store %cst_23, %arg4[%c1_24] : memref<2xf32, #tpu.memory_space<smem>>
    } else {
    }
    %c0 = arith.constant 0 : index
    %c0_1 = arith.constant 0 : index
    %3 = vector.load %arg1[%c0, %c0_1] : memref<8x16xf32, #tpu.memory_space<vmem>>, vector<8x16xf32>
    %c0_2 = arith.constant 0 : index
    %c0_3 = arith.constant 0 : index
    %4 = vector.load %arg2[%c0_2, %c0_3] : memref<8x1xi32, #tpu.memory_space<vmem>>, vector<8x1xi32>
    %5 = tpu.iota {dimensions = array<i32: 0>} : vector<8x1xi32>
    %c8_i32 = arith.constant 8 : i32
    %6 = arith.muli %arg0, %c8_i32 : i32
    %7 = vector.broadcast %6 : i32 to vector<8x1xi32>
    %8 = arith.addi %7, %5 : vector<8x1xi32>
    %c20_i32 = arith.constant 20 : i32
    %9 = vector.broadcast %c20_i32 : i32 to vector<8x1xi32>
    %10 = arith.cmpi slt, %8, %9 : vector<8x1xi32>
    %cst = arith.constant dense<0xFF800000> : vector<8xf32>
    %11 = vector.multi_reduction <maximumf>, %3, %cst [1] : vector<8x16xf32> to vector<8xf32>
    %12 = vector.shape_cast %11 : vector<8xf32> to vector<8x1xf32>
    %13 = vector.broadcast %12 : vector<8x1xf32> to vector<8x16xf32>
    %14 = arith.subf %3, %13 : vector<8x16xf32>
    %15 = math.exp %14 : vector<8x16xf32>
    %cst_4 = arith.constant dense<0.000000e+00> : vector<8xf32>
    %16 = vector.multi_reduction <add>, %15, %cst_4 [1] : vector<8x16xf32> to vector<8xf32>
    %17 = vector.shape_cast %16 : vector<8xf32> to vector<8x1xf32>
    %18 = tpu.reciprocal %17 : vector<8x1xf32> -> vector<8x1xf32>
    %19 = vector.broadcast %18 : vector<8x1xf32> to vector<8x16xf32>
    %20 = arith.mulf %15, %19 : vector<8x16xf32>
    %21 = math.log %17 : vector<8x1xf32>
    %22 = arith.mulf %20, %14 : vector<8x16xf32>
    %cst_5 = arith.constant dense<0.000000e+00> : vector<8xf32>
    %23 = vector.multi_reduction <add>, %22, %cst_5 [1] : vector<8x16xf32> to vector<8xf32>
    %24 = vector.shape_cast %23 : vector<8xf32> to vector<8x1xf32>
    %25 = arith.subf %21, %24 : vector<8x1xf32>
    %26 = tpu.iota {dimensions = array<i32: 1>} : vector<8x16xi32>
    %27 = vector.broadcast %4 : vector<8x1xi32> to vector<8x16xi32>
    %28 = arith.cmpi eq, %26, %27 : vector<8x16xi32>
    %29 = vector.broadcast %12 : vector<8x1xf32> to vector<8x16xf32>
    %30 = arith.cmpf oge, %3, %29 : vector<8x16xf32>
    %31 = arith.andi %28, %30 : vector<8x16xi1>
    %cst_6 = arith.constant 1.000000e+00 : f32
    %cst_7 = arith.constant 0.000000e+00 : f32
    %32 = vector.broadcast %cst_6 : f32 to vector<8x16xf32>
    %33 = vector.broadcast %cst_7 : f32 to vector<8x16xf32>
    %34 = arith.select %31, %32, %33 : vector<8x16xi1>, vector<8x16xf32>
    %cst_8 = arith.constant dense<0xFF800000> : vector<8xf32>
    %35 = vector.multi_reduction <maximumf>, %34, %cst_8 [1] : vector<8x16xf32> to vector<8xf32>
    %cst_9 = arith.constant 0.000000e+00 : f32
    %36 = vector.broadcast %cst_9 : f32 to vector<8xf32>
    %37 = arith.cmpf ogt, %35, %36 : vector<8xf32>
    %38 = vector.shape_cast %37 : vector<8xi1> to vector<8x1xi1>
    %cst_10 = arith.constant 1.000000e+00 : f32
    %39 = vector.broadcast %cst_10 : f32 to vector<8x1xf32>
    %40 = arith.cmpf ole, %25, %39 : vector<8x1xf32>
    %41 = math.tanh %25 : vector<8x1xf32>
    %cst_11 = arith.constant 1.000000e+00 : f32
    %42 = vector.broadcast %cst_11 : f32 to vector<8x1xf32>
    %43 = arith.subf %42, %18 : vector<8x1xf32>
    %44 = arith.select %38, %18, %43 : vector<8x1xi1>, vector<8x1xf32>
    %cst_12 = arith.constant 1.000000e+00 : f32
    %45 = vector.broadcast %cst_12 : f32 to vector<8x1xf32>
    %46 = arith.subf %45, %41 : vector<8x1xf32>
    %47 = arith.select %40, %46, %41 : vector<8x1xi1>, vector<8x1xf32>
    %48 = arith.mulf %44, %47 : vector<8x1xf32>
    %cst_13 = arith.constant 0.000000e+00 : f32
    %49 = vector.broadcast %cst_13 : f32 to vector<8x1xf32>
    %50 = arith.select %10, %48, %49 : vector<8x1xi1>, vector<8x1xf32>
    %51 = vector.shape_cast %50 : vector<8x1xf32> to vector<1x8x1xf32>
    %cst_14 = arith.constant dense<0.000000e+00> : vector<1xf32>
    %52 = vector.multi_reduction <add>, %51, %cst_14 [1, 2] : vector<1x8x1xf32> to vector<1xf32>
    %53 = vector.shape_cast %52 : vector<1xf32> to vector<1x1x1xf32>
    %54 = vector.extract %53[0, 0, 0] : f32 from vector<1x1x1xf32>
    %55 = arith.xori %38, %40 : vector<8x1xi1>
    %cst_15 = arith.constant dense<true> : vector<8x1xi1>
    %56 = arith.xori %55, %cst_15 : vector<8x1xi1>
    %57 = arith.andi %10, %56 : vector<8x1xi1>
    %58 = arith.select %57, %48, %49 : vector<8x1xi1>, vector<8x1xf32>
    %59 = vector.shape_cast %58 : vector<8x1xf32> to vector<1x8x1xf32>
    %cst_16 = arith.constant dense<0.000000e+00> : vector<1xf32>
    %60 = vector.multi_reduction <add>, %59, %cst_16 [1, 2] : vector<1x8x1xf32> to vector<1xf32>
    %61 = vector.shape_cast %60 : vector<1xf32> to vector<1x1x1xf32>
    %62 = vector.extract %61[0, 0, 0] : f32 from vector<1x1x1xf32>
    %c0_17 = arith.constant 0 : index
    %63 = memref.load %arg4[%c0_17] : memref<2xf32, #tpu.memory_space<smem>>
    %64 = arith.addf %63, %62 : f32
    %c0_18 = arith.constant 0 : index
    %65 = memref.load %arg4[%c0_18] : memref<2xf32, #tpu.memory_space<smem>>
    memref.store %64, %arg4[%c0_18] : memref<2xf32, #tpu.memory_space<smem>>
    %c1 = arith.constant 1 : index
    %66 = memref.load %arg4[%c1] : memref<2xf32, #tpu.memory_space<smem>>
    %67 = arith.addf %66, %54 : f32
    %c1_19 = arith.constant 1 : index
    %68 = memref.load %arg4[%c1_19] : memref<2xf32, #tpu.memory_space<smem>>
    memref.store %67, %arg4[%c1_19] : memref<2xf32, #tpu.memory_space<smem>>
    %c2_i32 = arith.constant 2 : i32
    %69 = arith.cmpi eq, %arg0, %c2_i32 : i32
    %70 = arith.extui %69 : i1 to i32
    %c0_i32_20 = arith.constant 0 : i32
    %71 = arith.cmpi ne, %70, %c0_i32_20 : i32
    scf.if %71 {
      %c0_21 = arith.constant 0 : index
      %72 = memref.load %arg4[%c0_21] : memref<2xf32, #tpu.memory_space<smem>>
      %c1_22 = arith.constant 1 : index
      %73 = memref.load %arg4[%c1_22] : memref<2xf32, #tpu.memory_space<smem>>
      %cst_23 = arith.constant 1.000000e-10 : f32
      %74 = arith.addf %73, %cst_23 : f32
      %75 = arith.divf %72, %74 : f32
      %cst_24 = arith.constant 1.000000e-10 : f32
      %76 = arith.addf %75, %cst_24 : f32
      %77 = math.log %76 : f32
      %cst_25 = arith.constant -1.000000e+00 : f32
      %78 = arith.mulf %cst_25, %77 : f32
      %79 = vector.broadcast %78 : f32 to vector<1x1xf32>
      %c0_26 = arith.constant 0 : index
      %c0_27 = arith.constant 0 : index
      %80 = vector.load %arg3[%c0_26, %c0_27] : memref<1x1xf32, #tpu.memory_space<vmem>>, vector<1x1xf32>
      tpu.vector_store %arg3[%c0_26, %c0_27], %79 {strides = array<i32>} : memref<1x1xf32, #tpu.memory_space<vmem>>, vector<1x1xf32>,
    } else {
    }
    return
  }
  func.func @transform_0(%arg0: i32) -> (i32, i32) {
    %c0_i32 = arith.constant 0 : i32
    %c0_i32_0 = arith.constant 0 : i32
    return %arg0, %c0_i32 : i32, i32
  }
  func.func @transform_1(%arg0: i32) -> (i32, i32) {
    %c0_i32 = arith.constant 0 : i32
    %c0_i32_0 = arith.constant 0 : i32
    return %arg0, %c0_i32 : i32, i32
  }
  func.func @transform_2(%arg0: i32) -> (i32, i32) {
    %c0_i32 = arith.constant 0 : i32
    %c0_i32_0 = arith.constant 0 : i32
    %c0_i32_1 = arith.constant 0 : i32
    return %c0_i32, %c0_i32_0 : i32, i32
  }
}

</mosaic_0001>

<llo_original>
// kernel: tpu_custom_call.1
$region0: #{tpu_custom_call.1}
  #allocation0 [shape = 'u32[]', space=smem, size = 0x4, offset = 0x4, fixed_abs, tag = 'smem constant byte address 0x4 - core index']
  #allocation1 [shape = 'u32[144,128]{1,0:T(1,128)}', space=vmem, size = 0x12000, scoped, tag = 'internal scratch']
  #allocation2 [shape = 'f32[2]{0:T(128)}', space=smem, size = 0x200, scoped, tag = 'scratch operand']
  %s0 = inlined_call_operand.vmem [shape: f32[20,16], index: 0, kind: input, shape index: {}]
  %s1 = inlined_call_operand.vmem [shape: s32[20,1], index: 1, kind: input, shape index: {}]
  %s2 = inlined_call_operand.hbm [shape: f32[1,1], index: 2, kind: output, shape index: {}]
  %s3 = sld [smem:[#allocation0]]
  $region49: #{tpu_custom_call.1} parent=0
    _
  %s5 = ssub.s32 1, %s3
  %s6 = scalar_select 0, %s5, %s3
  $region1: #{tpu_custom_call.1} parent=0
    #allocation3 [shape = 'u8[512]{0}', space=vmem, size = 0x400, scoped, tag = 'output window, operand 0, single buffered']
    #allocation4 [shape = 's32[2]{0}', space=sflag, size = 0x8, scoped, tag = 'scoped memory for tpu_custom_call.1']
    %7 = vsyncpa [#allocation4], 0
    loop: start=0, step=1, limit=5
    $region2: #{tpu_custom_call.1} parent=1 // loop_pre_header
      _
    $region3: #{tpu_custom_call.1} parent=1 // loop_header
      %s9 = sphi 0, %s13
      %p10 = scmp.ge.s32.totalorder %s9, 5
      %s19 = sphi 0, %s21
      %s22 = sphi 0, %s19
      %s23 = sphi 0, %s22
      %s39 = sphi 0, %s23
      %s45 = sphi 0, %s47
      %s48 = sphi 0, %s45
      %s49 = sphi 0, %s48
      %s65 = sphi 0, %s49
      %s69 = sphi 0, %s69
      %s71 = sphi 0, %s69
      %s72 = sphi 0, %s71
      %s86 = sphi 0, %s72
    $region4: #{tpu_custom_call.1} parent=1 // loop_header_branch
      %12 = sbr.rel (%p10) target = $region8
    $region5: #{tpu_custom_call.1} parent=1 // loop_body
      %s14 = ssub.s32 %s9, 1
      %s15 = ssub.s32 %s9, 2
      %s16 = sadd.s32 %s9, 1
      %s17 = ssub.s32 %s9, %s16
      %p18 = scmp.eq.s32.totalorder %s17, 0
      %s20 = sadd.s32 %s19, 1
      %s21 = scalar_select %p18, %s19, %s20
      %p24 = pneg %p18
      %p25 = scmp.eq.s32.totalorder %s9, 2
      %p26 = por %p24, %p25
      %p27 = scmp.ne.s32.totalorder %s19, %s22
      %p28 = scmp.eq.s32.totalorder %s9, 0
      %p29 = por %p27, %p28
      %p30 = scmp.ne.s32.totalorder %s19, %s22
      %p31 = scmp.eq.s32.totalorder %s14, 2
      %p32 = por %p30, %p31
      %p33 = scmp.ne.s32.totalorder %s22, %s23
      %p34 = scmp.eq.s32.totalorder %s14, 0
      %p35 = por %p33, %p34
      %p36 = scmp.ne.s32.totalorder %s22, %s23
      %p37 = scmp.eq.s32.totalorder %s15, 2
      %p38 = por %p36, %p37
      %p40 = scmp.ne.s32.totalorder %s23, %s39
      %p41 = scmp.eq.s32.totalorder %s15, 0
      %p42 = por %p40, %p41
      %s43 = ssub.s32 %s9, %s16
      %p44 = scmp.eq.s32.totalorder %s43, 0
      %s46 = sadd.s32 %s45, 1
      %s47 = scalar_select %p44, %s45, %s46
      %p50 = pneg %p44
      %p51 = scmp.eq.s32.totalorder %s9, 2
      %p52 = por %p50, %p51
      %p53 = scmp.ne.s32.totalorder %s45, %s48
      %p54 = scmp.eq.s32.totalorder %s9, 0
      %p55 = por %p53, %p54
      %p56 = scmp.ne.s32.totalorder %s45, %s48
      %p57 = scmp.eq.s32.totalorder %s14, 2
      %p58 = por %p56, %p57
      %p59 = scmp.ne.s32.totalorder %s48, %s49
      %p60 = scmp.eq.s32.totalorder %s14, 0
      %p61 = por %p59, %p60
      %p62 = scmp.ne.s32.totalorder %s48, %s49
      %p63 = scmp.eq.s32.totalorder %s15, 2
      %p64 = por %p62, %p63
      %p66 = scmp.ne.s32.totalorder %s49, %s65
      %p67 = scmp.eq.s32.totalorder %s15, 0
      %p68 = por %p66, %p67
      %s70 = sadd.s32 %s69, 1
      %p73 = scmp.eq.s32.totalorder %s9, 2
      %p74 = scmp.ne.s32.totalorder %s69, %s71
      %p75 = scmp.eq.s32.totalorder %s9, 0
      %p76 = por %p74, %p75
      %p77 = scmp.ne.s32.totalorder %s69, %s71
      %p78 = scmp.eq.s32.totalorder %s14, 2
      %p79 = por %p77, %p78
      %p80 = scmp.ne.s32.totalorder %s71, %s72
      %p81 = scmp.eq.s32.totalorder %s14, 0
      %p82 = por %p80, %p81
      %p83 = scmp.ne.s32.totalorder %s71, %s72
      %p84 = scmp.eq.s32.totalorder %s15, 2
      %p85 = por %p83, %p84
      %p87 = scmp.ne.s32.totalorder %s72, %s86
      %p88 = scmp.eq.s32.totalorder %s15, 0
      %p89 = por %p87, %p88
      %p90 = scmp.le.s32.totalorder 1, %s9
      %p91 = scmp.lt.s32.totalorder %s9, 4
      %p92 = pnand %p90, %p91
      %p93 = pneg %p92
      // Predicated region
      $region9: #{tpu_custom_call.1} parent=5 // pred_check
        _
      $region10: #{tpu_custom_call.1} parent=5 // pred_check_branch
        %95 = sbr.rel (%p92) target = $region12
      $region11: #{tpu_custom_call.1} parent=5 // pred_region
        %s96 = ssub.s32 %s9, 1
      $region12: #{tpu_custom_call.1} parent=5 // pred_fallthru
        _
      %p97 = scmp.lt.s32.totalorder %s9, 3
      // Predicated region
      $region13: #{tpu_custom_call.1} parent=5 // pred_check
        %p98 = pneg %p97
      $region14: #{tpu_custom_call.1} parent=5 // pred_check_branch
        %100 = sbr.rel (%p98) target = $region16
      $region15: #{tpu_custom_call.1} parent=5 // pred_region
        // Predicated region
        $region17: #{tpu_custom_call.1} parent=15 // pred_check
          %p101 = pneg %p29
        $region18: #{tpu_custom_call.1} parent=15 // pred_check_branch
          %103 = sbr.rel (%p101) target = $region20
        $region19: #{tpu_custom_call.1} parent=15 // pred_region
          %p104 = scmp.lt.s32.totalorder %s9, 2
          %s105 = scalar_select %p104, %s9, 2
          %s106 = smul.addr %s105, 8
          %s107 = scalar_lea.vmem %s0, %s106
        $region20: #{tpu_custom_call.1} parent=15 // pred_fallthru
          _
        // Predicated region
        $region21: #{tpu_custom_call.1} parent=15 // pred_check
          %p108 = pneg %p55
        $region22: #{tpu_custom_call.1} parent=15 // pred_check_branch
          %110 = sbr.rel (%p108) target = $region24
        $region23: #{tpu_custom_call.1} parent=15 // pred_region
          %p111 = scmp.lt.s32.totalorder %s9, 2
          %s112 = scalar_select %p111, %s9, 2
          %s113 = smul.addr %s112, 8
          %s114 = scalar_lea.vmem %s1, %s113
        $region24: #{tpu_custom_call.1} parent=15 // pred_fallthru
          _
      $region16: #{tpu_custom_call.1} parent=5 // pred_fallthru
        _
      %p115 = scmp.le.s32.totalorder 1, %s9
      %p116 = scmp.lt.s32.totalorder %s9, 4
      %p117 = pnand %p115, %p116
      %p118 = pneg %p117
      // Predicated region
      $region25: #{tpu_custom_call.1} parent=5 // pred_check
        _
      $region26: #{tpu_custom_call.1} parent=5 // pred_check_branch
        %120 = sbr.rel (%p117) target = $region28
      $region27: #{tpu_custom_call.1} parent=5 // pred_region
        %s121 = ssub.s32 %s9, 1
        %p122 = scmp.lt.s32.totalorder %s14, 2
        %s123 = scalar_select %p122, %s14, 2
        %s124 = smul.addr %s123, 8
        %s125 = scalar_lea.vmem %s0, %s124
        %p126 = pneg %p35
        %p127 = pneg %p32
        %p128 = scmp.lt.s32.totalorder %s14, 2
        %s129 = scalar_select %p128, %s14, 2
        %s130 = smul.addr %s129, 8
        %s131 = scalar_lea.vmem %s1, %s130
        %p132 = pneg %p61
        %p133 = pneg %p58
        %p134 = pneg %p82
        %p135 = pneg %p79
        %p136 = scmp.lt.s32.totalorder %s14, 2
        %s137 = scalar_select %p136, %s14, 2
        %s138 = smul.addr %s137, 8
        %s139 = scalar_lea.vmem %s0, %s138
        %p140 = scmp.lt.s32.totalorder %s14, 2
        %s141 = scalar_select %p140, %s14, 2
        %s142 = smul.addr %s141, 8
        %s143 = scalar_lea.vmem %s1, %s142
        %p144 = scmp.eq.s32.totalorder %s14, 0
        // Predicated region
        $region29: #{tpu_custom_call.1} parent=27 // pred_check
          %p145 = pneg %p144
        $region30: #{tpu_custom_call.1} parent=27 // pred_check_branch
          %147 = sbr.rel (%p145) target = $region32
        $region31: #{tpu_custom_call.1} parent=27 // pred_region
          %s148 = scalar_lea.smem [#allocation2], 0
          %149 = sst [smem:[%s148]] 0.0
          %s150 = scalar_lea.smem [#allocation2], 1
          %151 = sst [smem:[%s150]] 0.0
        $region32: #{tpu_custom_call.1} parent=27 // pred_fallthru
          _
        %v152 = vld [vmem:[%s139] sm:$0xff]
        %v153 = vld [vmem:[%s143] sm:$0xff]
        %v154 = vlaneseq
        %v155 = vshrl.u32 %v154, 7
        %s156 = smul.u32 %s14, 8
        %v157 = vstv %s156
        %v158 = vadd.s32 %v157, %v155
        %vm159 = vcmp.lt.s32.totalorder %v158, 20
        %vm160 = vcmask 130048
        %v161 = vsel %vm160, %v152, -inf
        %162 = vmax.xlane.f32.xlu0 %v161
        %v163 = vpop.xlane.xlu0 %162
        %v164 = vsub.f32 %v152, %v163
        %v165 = vmul.f32 %v164, 1.442695
        %v166 = vpow.pop %v165
        %v167 = vsel %vm160, %v166, 0.0
        %168 = vadd.xlane.f32.xlu0 %v167
        %v169 = vpop.xlane.xlu0 %168
        %v170 = vrcp.pop %v169
        %v171 = vmul.f32 %v166, %v170
        %v172 = vlog2.pop %v169
        %v173 = vmul.f32 %v172, 0.6931472
        %v174 = vmul.f32 %v171, %v164
        %v175 = vsel %vm160, %v174, 0.0
        %176 = vadd.xlane.f32.xlu0 %v175
        %v177 = vpop.xlane.xlu0 %176
        %v178 = vsub.f32 %v173, %v177
        %v179 = vlaneseq
        %v180 = vand.u32 %v179, 127
        %181 = vset.pattern.permute.xlu0 0
        %182 = vperm.xlu0 %181, %v153
        %v183 = vpop.permute.xlu0 %182
        %vm184 = vcmp.eq.s32.totalorder %v180, %v183
        %vm185 = vcmp.ge.f32.partialorder %v152, %v163
        %vm186 = vmand %vm184, %vm185
        %v187 = vsel %vm186, 1.0, 0.0
        %v188 = vsel %vm160, %v187, -inf
        %189 = vmax.xlane.f32.xlu0 %v188
        %v190 = vpop.xlane.xlu0 %189
        %vm191 = vcmp.gt.f32.partialorder %v190, 0.0
        %vm192 = vcmp.le.f32.partialorder %v178, 1.0
        %v193 = vtanh.pop %v178
        %v194 = vsub.f32 1.0, %v170
        %v195 = vsel %vm191, %v170, %v194
        %v196 = vsub.f32 1.0, %v193
        %v197 = vsel %vm192, %v196, %v193
        %v198 = vmul.f32 %v195, %v197
        %v199 = vsel %vm159, %v198, 0.0
        %vm200 = vcmask 7168
        %v201 = vsel %vm200, %v199, 0.0
        %202 = vadd.xlane.f32.xlu0 %v201
        %v203 = vpop.xlane.xlu0 %202
        %v204 = vrot.slane %v203, 4
        %v205 = vadd.f32 %v203, %v204
        %v206 = vrot.slane %v205, 2
        %v207 = vadd.f32 %v205, %v206
        %v208 = vrot.slane %v207, 1
        %v209 = vadd.f32 %v207, %v208
        %s210 = vtos %v209
        %vm211 = vmxor %vm191, %vm192
        %vm212 = vmxor %vm211, 1
        %vm213 = vmand %vm159, %vm212
        %v214 = vsel %vm213, %v198, 0.0
        %v215 = vsel %vm200, %v214, 0.0
        %216 = vadd.xlane.f32.xlu0 %v215
        %v217 = vpop.xlane.xlu0 %216
        %v218 = vrot.slane %v217, 4
        %v219 = vadd.f32 %v217, %v218
        %v220 = vrot.slane %v219, 2
        %v221 = vadd.f32 %v219, %v220
        %v222 = vrot.slane %v221, 1
        %v223 = vadd.f32 %v221, %v222
        %s224 = vtos %v223
        %s225 = sld [smem:[#allocation2]]
        %s226 = sadd.f32 %s225, %s224
        %s227 = scalar_lea.smem [#allocation2], 0
        %228 = sst [smem:[%s227]] %s226
        %s229 = sld [smem:[#allocation2 + $0x1]]
        %s230 = sadd.f32 %s229, %s210
        %s231 = scalar_lea.smem [#allocation2], 1
        %232 = sst [smem:[%s231]] %s230
        %p233 = scmp.eq.s32.totalorder %s14, 2
        // Predicated region
        $region33: #{tpu_custom_call.1} parent=27 // pred_check
          %p234 = pneg %p233
        $region34: #{tpu_custom_call.1} parent=27 // pred_check_branch
          %236 = sbr.rel (%p234) target = $region36
        $region35: #{tpu_custom_call.1} parent=27 // pred_region
          %s237 = sld [smem:[#allocation2]]
          %s238 = sld [smem:[#allocation2 + $0x1]]
          %s239 = sadd.f32 %s238, 1e-10
          %v240 = vstv %s239
          %v241 = vrcp.pop %v240
          %s242 = vtos %v241
          %s243 = smul.f32 %s237, %s242
          %s244 = sadd.f32 %s243, 1e-10
          %v245 = vstv %s244
          %v246 = vlog2.pop %v245
          %v247 = vmul.f32 %v246, 0.6931472
          %s248 = vtos %v247
          %s249 = smul.f32 %s248, -1.0
          %v250 = vstv %s249
          %vm251 = vcmask 0
          %252 = vst.msk [vmem:[#allocation3] sm:$0x1] %vm251, %v250
        $region36: #{tpu_custom_call.1} parent=27 // pred_fallthru
          _
        // Predicated region
        $region37: #{tpu_custom_call.1} parent=27 // pred_check
          %p253 = pneg %p79
        $region38: #{tpu_custom_call.1} parent=27 // pred_check_branch
          %255 = sbr.rel (%p253) target = $region40
        $region39: #{tpu_custom_call.1} parent=27 // pred_region
          %s257 = ssub.s32 16, 16
          %258 = vsyncadd [#allocation4], %s257
          %s260 = sshll.u32 [#allocation3], 4
          %s261 = int_to_ptr.vmem [resolvable:$true] %s260
          %263 = dma.vmem_to_hbm [thread:$0]  %s261, 16, %s2, [#allocation4]
        $region40: #{tpu_custom_call.1} parent=27 // pred_fallthru
          _
        // Predicated region
        $region41: #{tpu_custom_call.1} parent=27 // pred_check
          %p264 = pneg %p79
        $region42: #{tpu_custom_call.1} parent=27 // pred_check_branch
          %266 = sbr.rel (%p264) target = $region44
        $region43: #{tpu_custom_call.1} parent=27 // pred_region
          %267 = dma.done [#allocation4], 16
        $region44: #{tpu_custom_call.1} parent=27 // pred_fallthru
          _
      $region28: #{tpu_custom_call.1} parent=5 // pred_fallthru
        _
      %p268 = scmp.le.s32.totalorder 2, %s9
      // Predicated region
      $region45: #{tpu_custom_call.1} parent=5 // pred_check
        %p269 = pneg %p268
      $region46: #{tpu_custom_call.1} parent=5 // pred_check_branch
        %271 = sbr.rel (%p269) target = $region48
      $region47: #{tpu_custom_call.1} parent=5 // pred_region
        %s272 = ssub.s32 %s9, 2
      $region48: #{tpu_custom_call.1} parent=5 // pred_fallthru
        _
    $region6: #{tpu_custom_call.1} parent=1 // loop_footer
      %s13 = sadd.s32 1, %s9
    $region7: #{tpu_custom_call.1} parent=1 // loop_footer_branch
      %8 = sbr.rel target = $region3
    $region8: #{tpu_custom_call.1} parent=1 // loop_exit
      _
    %273 = vsyncpa [#allocation4], 1
    %s274 = scalar_lea.sflag [#allocation4], 1
    %275 = vsyncpa %s274, 1

</llo_original>
